<compile_context>
chip_gen: v5e
topology: v5e:2x2
jax: 0.10.0
libtpu: 0.0.40
codegen_flags: <defaults>
</compile_context>

<pallas_src>
import functools
import math

import jax
import jax.numpy as jnp
from jax import lax
from jax.experimental import pallas as pl
from jax.experimental.pallas import tpu as pltpu


def _round_up(x, m):
    return (x + m - 1) // m * m


def _mhca_kernel(x_ref, q_ref, qres_ref, wkT_ref, wvT_ref, wfc_ref,
                 gamma_ref, beta_ref, out_ref,
                 m_scr, l_scr, acc_scr, *, eps, s_valid, d_k, d_v):
    """One (batch, sequence-tile) grid cell of flash-style cross attention.

    x_ref    : (1, tile_s, D)  sequence tile of the current batch element
    q_ref    : (H, T, d_k)     pre-projected, pre-scaled learned queries
    qres_ref : (T, D)          learned query parameter (residual add), f32
    wkT_ref  : (H*d_k, D)      K projection weight, transposed
    wvT_ref  : (H*d_v, D)      V projection weight, transposed
    wfc_ref  : (H*d_v, D)      output projection weight (flat)
    gamma/beta : (1, D)        LayerNorm affine, f32
    out_ref  : (1, T, D)
    m/l/acc  : (H,T,1)/(H,T,1)/(H,T,d_v) f32 online-softmax state (VMEM scratch)
    """
    s_idx = pl.program_id(1)

    @pl.when(s_idx == 0)
    def _():
        m_scr[...] = jnp.full_like(m_scr, -jnp.inf)
        l_scr[...] = jnp.zeros_like(l_scr)
        acc_scr[...] = jnp.zeros_like(acc_scr)

    cd = x_ref.dtype                       # matmul-input dtype (bf16 by default)
    n_head = q_ref.shape[0]
    tile_s = x_ref.shape[1]

    x_t = x_ref[0]                                               # (tile_s, D)

    # Fused K/V projections: one full-lane MXU matmul each (M = H*dk or H*dv,
    # N = tile_s, K = D), produced directly in "transposed" layout so the head
    # split below is a sublane-dim reshape, not a 3-D transpose.
    kT = lax.dot_general(wkT_ref[...], x_t, (((1,), (1,)), ((), ())),
                         preferred_element_type=jnp.float32)     # (H*dk, ts)
    vT = lax.dot_general(wvT_ref[...], x_t, (((1,), (1,)), ((), ())),
                         preferred_element_type=jnp.float32)     # (H*dv, ts)
    kT = kT.astype(cd).reshape(n_head, d_k, tile_s)              # (H, dk, ts)
    vT = vT.astype(cd).reshape(n_head, d_v, tile_s)              # (H, dv, ts)

    # Scores (q already carries the 1/sqrt(d_k) scale): (H,T,dk) x (H,dk,ts).
    scores = lax.dot_general(q_ref[...], kT, (((2,), (1,)), ((0,), (0,))),
                             preferred_element_type=jnp.float32)  # (H, T, ts)

    if s_valid is not None:   # mask key positions padded past the true seq len
        kpos = s_idx * tile_s + lax.broadcasted_iota(jnp.int32, (1, 1, tile_s), 2)
        scores = jnp.where(kpos < s_valid, scores, -jnp.inf)

    # Online softmax update.
    m_prev = m_scr[...]
    m_new = jnp.maximum(m_prev, jnp.max(scores, axis=-1, keepdims=True))
    alpha = jnp.exp(m_prev - m_new)
    p = jnp.exp(scores - m_new)
    l_scr[...] = alpha * l_scr[...] + jnp.sum(p, axis=-1, keepdims=True)
    pv = lax.dot_general(p.astype(cd), vT, (((2,), (2,)), ((0,), (0,))),
                         preferred_element_type=jnp.float32)      # (H, T, dv)
    acc_scr[...] = alpha * acc_scr[...] + pv
    m_scr[...] = m_new

    @pl.when(s_idx == pl.num_programs(1) - 1)
    def _():
        # Exact normalization (finalize runs once per batch element).
        o_heads = acc_scr[...] / l_scr[...]                       # (H, T, dv) f32
        # Relayout once (lane-concat of heads) -> (T, H*dv), then ONE flat fc
        # matmul with K = H*dv and lane-dense N = D.
        o_cat = jnp.concatenate([o_heads[h] for h in range(n_head)], axis=-1)
        o = jnp.dot(o_cat.astype(cd), wfc_ref[...],
                    preferred_element_type=jnp.float32)           # (T, D)
        o = o + qres_ref[...].astype(jnp.float32)                 # residual (+ q)

        # LayerNorm over d_model (biased variance, eps inside sqrt), in f32.
        mean = jnp.mean(o, axis=-1, keepdims=True)
        cent = o - mean
        var = jnp.mean(cent * cent, axis=-1, keepdims=True)
        y = cent * lax.rsqrt(var + eps)
        y = y * gamma_ref[...].astype(jnp.float32) + beta_ref[...].astype(jnp.float32)
        out_ref[0] = y.astype(out_ref.dtype)


def _invariant_spec(shape):
    """BlockSpec for a grid-invariant operand: constant index map and (when the
    jax version supports it) a single VMEM buffer instead of double-buffering."""
    index_map = lambda b, s: (0,) * len(shape)
    try:
        return pl.BlockSpec(shape, index_map, pipeline_mode=pl.Buffered(1))
    except Exception:  # pragma: no cover - jax without BlockSpec.pipeline_mode
        return pl.BlockSpec(shape, index_map)


def multi_head_cross_attention(x, q_param, w_qs, w_ks, w_vs, w_fc,
                               ln_gamma, ln_beta, *, n_head, d_k, d_v,
                               eps=1e-6, compute_dtype=None, tile_s=None):
    """x: (B, S, D) -> (B, n_token, D).

    Weights are stored (in_dim, out_dim), i.e. transposed vs. nn.Linear.weight.
    compute_dtype controls the MXU input dtype (default bf16 when x is f32);
    accumulation / softmax / LayerNorm stay in f32 inside the kernel.
    """
    B, S, D = x.shape
    T = q_param.shape[1]
    if compute_dtype is None:
        compute_dtype = jnp.bfloat16 if x.dtype == jnp.float32 else x.dtype
    cd = jnp.dtype(compute_dtype)

    # ---- batch-invariant work hoisted out of the kernel (runs once in XLA) ----
    inv_temp = 1.0 / math.sqrt(d_k)
    q_proj = (q_param.reshape(T, D).astype(jnp.float32)
              @ w_qs.astype(jnp.float32)) * inv_temp              # (T, H*dk)
    q3 = q_proj.reshape(T, n_head, d_k).transpose(1, 0, 2)        # (H, T, dk)
    qres = q_param.reshape(T, D).astype(jnp.float32)              # residual term

    # Pad n_token to a sublane multiple so scores/acc/m/l tiles are dense.
    T_pad = max(8, _round_up(T, 8))
    if T_pad != T:
        q3 = jnp.pad(q3, ((0, 0), (0, T_pad - T), (0, 0)))
        qres = jnp.pad(qres, ((0, T_pad - T), (0, 0)))

    wkT = jnp.transpose(w_ks)                                     # (H*dk, D)
    wvT = jnp.transpose(w_vs)                                     # (H*dv, D)
    gamma2d = ln_gamma.reshape(1, D).astype(jnp.float32)
    beta2d = ln_beta.reshape(1, D).astype(jnp.float32)

    # ---- sequence tiling: grid = ceil(S / tile_s), padded keys masked ----
    if tile_s is None:
        # TODO(synk): sweep 256/512/1024 per chip generation (64 MiB VMEM on v7x).
        tile_s = 512 if S > 512 else _round_up(S, 8)
    tile_s = min(_round_up(tile_s, 8), _round_up(S, 8))
    n_s = pl.cdiv(S, tile_s)
    S_pad = n_s * tile_s
    x_p = x if S_pad == S else jnp.pad(x, ((0, 0), (0, S_pad - S), (0, 0)))
    s_valid = S if S_pad != S else None

    x_c = x_p.astype(cd)
    q3_c = q3.astype(cd)
    wkT_c = wkT.astype(cd)
    wvT_c = wvT.astype(cd)
    wfc_c = w_fc.astype(cd)

    # ---- explicit VMEM budget: single-buffered invariants + double-buffered
    #      x tile + output + f32 scratch, with headroom ----
    esz = cd.itemsize
    invariant_b = ((q3_c.size + wkT_c.size + wvT_c.size + wfc_c.size) * esz
                   + (qres.size + 2 * D) * 4)
    pipelined_b = 2 * tile_s * D * esz + 2 * T_pad * D * jnp.dtype(x.dtype).itemsize
    scratch_b = n_head * T_pad * (d_v + 2) * 4
    vmem_limit = int(min(max(invariant_b + pipelined_b + scratch_b + (8 << 20),
                             32 << 20), 100 << 20))

    kernel = functools.partial(_mhca_kernel, eps=eps, s_valid=s_valid,
                               d_k=d_k, d_v=d_v)

    out = pl.pallas_call(
        kernel,
        out_shape=jax.ShapeDtypeStruct((B, T_pad, D), x.dtype),
        grid_spec=pltpu.PrefetchScalarGridSpec(
            num_scalar_prefetch=0,
            grid=(B, n_s),
            in_specs=[
                pl.BlockSpec((1, tile_s, D), lambda b, s: (b, s, 0)),   # x tile
                _invariant_spec((n_head, T_pad, d_k)),                  # q (proj, scaled)
                _invariant_spec((T_pad, D)),                            # q residual
                _invariant_spec((n_head * d_k, D)),                     # w_ks^T
                _invariant_spec((n_head * d_v, D)),                     # w_vs^T
                _invariant_spec((n_head * d_v, D)),                     # fc (flat)
                _invariant_spec((1, D)),                                # ln gamma
                _invariant_spec((1, D)),                                # ln beta
            ],
            out_specs=pl.BlockSpec((1, T_pad, D), lambda b, s: (b, 0, 0)),
            scratch_shapes=[
                pltpu.VMEM((n_head, T_pad, 1), jnp.float32),    # running max
                pltpu.VMEM((n_head, T_pad, 1), jnp.float32),    # running denom
                pltpu.VMEM((n_head, T_pad, d_v), jnp.float32),  # running acc
            ],
        ),
        compiler_params=pltpu.CompilerParams(
            dimension_semantics=("parallel", "arbitrary"),
            vmem_limit_bytes=vmem_limit),
    )(x_c, q3_c, qres, wkT_c, wvT_c, wfc_c, gamma2d, beta2d)

    return out[:, :T, :] if T_pad != T else out


def _reference(x, q_param, w_qs, w_ks, w_vs, w_fc, ln_gamma, ln_beta,
               n_head, d_k, d_v, eps=1e-6):
    """Plain-JAX reference mirroring the PyTorch forward (eval mode), f32."""
    hp = jax.lax.Precision.HIGHEST
    B, S, D = x.shape
    T = q_param.shape[1]
    q = jnp.einsum('otd,de->ote', q_param, w_qs, precision=hp)
    q = q.reshape(1, T, n_head, d_k).transpose(0, 2, 1, 3)
    k = jnp.einsum('bsd,de->bse', x, w_ks, precision=hp)
    k = k.reshape(B, S, n_head, d_k).transpose(0, 2, 1, 3)
    v = jnp.einsum('bsd,de->bse', x, w_vs, precision=hp)
    v = v.reshape(B, S, n_head, d_v).transpose(0, 2, 1, 3)
    attn = jnp.einsum('bhtd,bhsd->bhts', q / (d_k ** 0.5), k, precision=hp)
    attn = jax.nn.softmax(attn, axis=-1)
    o = jnp.einsum('bhts,bhsd->bhtd', attn, v, precision=hp)
    o = o.transpose(0, 2, 1, 3).reshape(B, T, n_head * d_v)
    o = jnp.einsum('bte,ed->btd', o, w_fc, precision=hp)
    o = o + q_param
    mean = jnp.mean(o, axis=-1, keepdims=True)
    var = jnp.mean((o - mean) ** 2, axis=-1, keepdims=True)
    return (o - mean) / jnp.sqrt(var + eps) * ln_gamma + ln_beta


if __name__ == "__main__":
    B, S, D = 2, 8, 32          # batch, seq_len, d_model
    n_token, n_head, d_k, d_v = 4, 2, 8, 8

    key = jax.random.PRNGKey(0)
    kx, kx2, kq, k1, k2, k3, k4, k5, k6 = jax.random.split(key, 9)

    x = jax.random.normal(kx, (B, S, D), dtype=jnp.float32)

    # Deterministic parameter init mirroring the PyTorch __init__ distributions.
    q_bound = math.sqrt(1.0 / d_k)
    q_param = jax.random.uniform(kq, (1, n_token, D), jnp.float32,
                                 minval=-q_bound, maxval=q_bound)
    lin_bound = 1.0 / math.sqrt(D)
    w_qs = jax.random.uniform(k1, (D, n_head * d_k), jnp.float32,
                              minval=-lin_bound, maxval=lin_bound)
    w_ks = jax.random.uniform(k2, (D, n_head * d_k), jnp.float32,
                              minval=-lin_bound, maxval=lin_bound)
    w_vs = jax.random.uniform(k3, (D, n_head * d_v), jnp.float32,
                              minval=-lin_bound, maxval=lin_bound)
    fc_bound = 1.0 / math.sqrt(n_head * d_v)
    w_fc = jax.random.uniform(k4, (n_head * d_v, D), jnp.float32,
                              minval=-fc_bound, maxval=fc_bound)
    ln_gamma = 1.0 + 0.1 * jax.random.normal(k5, (D,), jnp.float32)
    ln_beta = 0.1 * jax.random.normal(k6, (D,), jnp.float32)

    args = (q_param, w_qs, w_ks, w_vs, w_fc, ln_gamma, ln_beta)

    # Test 1: single sequence tile, f32 matmul inputs.
    out = multi_head_cross_attention(x, *args, n_head=n_head, d_k=d_k, d_v=d_v,
                                     compute_dtype=jnp.float32)
    out = jax.block_until_ready(out)
    ref = _reference(x, *args, n_head=n_head, d_k=d_k, d_v=d_v)
    assert out.shape == (B, n_token, D)
    err1 = float(jnp.max(jnp.abs(out - ref)))
    assert jnp.allclose(out, ref, atol=3e-2, rtol=3e-2), \
        f"f32 mismatch vs reference, max|diff|={err1}"

    # Test 2: multiple sequence tiles + padded-key masking + padded n_token,
    # default bf16 matmul inputs.
    S2 = 20
    x2 = jax.random.normal(kx2, (B, S2, D), dtype=jnp.float32)
    out2 = multi_head_cross_attention(x2, *args, n_head=n_head, d_k=d_k, d_v=d_v,
                                      tile_s=8)
    out2 = jax.block_until_ready(out2)
    ref2 = _reference(x2, *args, n_head=n_head, d_k=d_k, d_v=d_v)
    assert out2.shape == (B, n_token, D)
    err2 = float(jnp.max(jnp.abs(out2 - ref2)))
    assert jnp.allclose(out2, ref2, atol=8e-2, rtol=8e-2), \
        f"bf16 mismatch vs reference, max|diff|={err2}"

    print("KERNEL_OK")
</pallas_src>

<mosaic_0001>
module attributes {stable_mosaic.version = 11 : i64} {
  func.func @_mhca_kernel(%arg0: i32, %arg1: i32, %arg2: memref<1x8x32xf32, #tpu.memory_space<vmem>>, %arg3: memref<2x8x8xf32, #tpu.memory_space<vmem>>, %arg4: memref<8x32xf32, #tpu.memory_space<vmem>>, %arg5: memref<16x32xf32, #tpu.memory_space<vmem>>, %arg6: memref<16x32xf32, #tpu.memory_space<vmem>>, %arg7: memref<16x32xf32, #tpu.memory_space<vmem>>, %arg8: memref<1x32xf32, #tpu.memory_space<vmem>>, %arg9: memref<1x32xf32, #tpu.memory_space<vmem>>, %arg10: memref<1x8x32xf32, #tpu.memory_space<vmem>>, %arg11: memref<2x8x1xf32, #tpu.memory_space<vmem>>, %arg12: memref<2x8x1xf32, #tpu.memory_space<vmem>>, %arg13: memref<2x8x8xf32, #tpu.memory_space<vmem>>) attributes {dimension_semantics = [#tpu.dimension_semantics<parallel>, #tpu.dimension_semantics<arbitrary>], iteration_bounds = array<i64: 2, 1>, scalar_prefetch = 0 : i64, scratch_operands = 3 : i64, tpu.core_type = #tpu.core_type<tc>, window_params = [{transform_indices = @transform_0, window_bounds = array<i64: 1, 8, 32>}, {pipeline_mode = #tpu.pipeline_mode<synchronous>, transform_indices = @transform_1, window_bounds = array<i64: 2, 8, 8>}, {pipeline_mode = #tpu.pipeline_mode<synchronous>, transform_indices = @transform_2, window_bounds = array<i64: 8, 32>}, {pipeline_mode = #tpu.pipeline_mode<synchronous>, transform_indices = @transform_3, window_bounds = array<i64: 16, 32>}, {pipeline_mode = #tpu.pipeline_mode<synchronous>, transform_indices = @transform_4, window_bounds = array<i64: 16, 32>}, {pipeline_mode = #tpu.pipeline_mode<synchronous>, transform_indices = @transform_5, window_bounds = array<i64: 16, 32>}, {pipeline_mode = #tpu.pipeline_mode<synchronous>, transform_indices = @transform_6, window_bounds = array<i64: 1, 32>}, {pipeline_mode = #tpu.pipeline_mode<synchronous>, transform_indices = @transform_7, window_bounds = array<i64: 1, 32>}, {transform_indices = @transform_8, window_bounds = array<i64: 1, 8, 32>}]} {
    %c0_i32 = arith.constant 0 : i32
    %0 = arith.cmpi eq, %arg1, %c0_i32 : i32
    %1 = arith.extui %0 : i1 to i32
    %c0_i32_0 = arith.constant 0 : i32
    %2 = arith.cmpi ne, %1, %c0_i32_0 : i32
    scf.if %2 {
      %cst_35 = arith.constant 0xFF800000 : f32
      %38 = vector.broadcast %cst_35 : f32 to vector<2x8x1xf32>
      %c0_36 = arith.constant 0 : index
      %c0_37 = arith.constant 0 : index
      %c0_38 = arith.constant 0 : index
      %39 = vector.load %arg11[%c0_36, %c0_37, %c0_38] : memref<2x8x1xf32, #tpu.memory_space<vmem>>, vector<2x8x1xf32>
      tpu.vector_store %arg11[%c0_36, %c0_37, %c0_38], %38 {strides = array<i32>} : memref<2x8x1xf32, #tpu.memory_space<vmem>>, vector<2x8x1xf32>,
      %cst_39 = arith.constant 0.000000e+00 : f32
      %40 = vector.broadcast %cst_39 : f32 to vector<2x8x1xf32>
      %c0_40 = arith.constant 0 : index
      %c0_41 = arith.constant 0 : index
      %c0_42 = arith.constant 0 : index
      %41 = vector.load %arg12[%c0_40, %c0_41, %c0_42] : memref<2x8x1xf32, #tpu.memory_space<vmem>>, vector<2x8x1xf32>
      tpu.vector_store %arg12[%c0_40, %c0_41, %c0_42], %40 {strides = array<i32>} : memref<2x8x1xf32, #tpu.memory_space<vmem>>, vector<2x8x1xf32>,
      %cst_43 = arith.constant 0.000000e+00 : f32
      %42 = vector.broadcast %cst_43 : f32 to vector<2x8x8xf32>
      %c0_44 = arith.constant 0 : index
      %c0_45 = arith.constant 0 : index
      %c0_46 = arith.constant 0 : index
      %43 = vector.load %arg13[%c0_44, %c0_45, %c0_46] : memref<2x8x8xf32, #tpu.memory_space<vmem>>, vector<2x8x8xf32>
      tpu.vector_store %arg13[%c0_44, %c0_45, %c0_46], %42 {strides = array<i32>} : memref<2x8x8xf32, #tpu.memory_space<vmem>>, vector<2x8x8xf32>,
    } else {
    }
    %c0 = arith.constant 0 : index
    %c0_1 = arith.constant 0 : index
    %c0_2 = arith.constant 0 : index
    %3 = vector.load %arg2[%c0, %c0_1, %c0_2] : memref<1x8x32xf32, #tpu.memory_space<vmem>>, vector<1x8x32xf32>
    %4 = vector.shape_cast %3 : vector<1x8x32xf32> to vector<8x32xf32>
    %c0_3 = arith.constant 0 : index
    %c0_4 = arith.constant 0 : index
    %5 = vector.load %arg5[%c0_3, %c0_4] : memref<16x32xf32, #tpu.memory_space<vmem>>, vector<16x32xf32>
    %cst = arith.constant dense<0.000000e+00> : vector<16x8xf32>
    %6 = tpu.matmul %5, %4, %cst {dimension_numbers = #tpu.dot_dimension_numbers<[1], [1], [0], [0], [0, 0, 1, 0], [], []>} : vector<16x32xf32>, vector<8x32xf32>, vector<16x8xf32> -> vector<16x8xf32>
    %c0_5 = arith.constant 0 : index
    %c0_6 = arith.constant 0 : index
    %7 = vector.load %arg6[%c0_5, %c0_6] : memref<16x32xf32, #tpu.memory_space<vmem>>, vector<16x32xf32>
    %cst_7 = arith.constant dense<0.000000e+00> : vector<16x8xf32>
    %8 = tpu.matmul %7, %4, %cst_7 {dimension_numbers = #tpu.dot_dimension_numbers<[1], [1], [0], [0], [0, 0, 1, 0], [], []>} : vector<16x32xf32>, vector<8x32xf32>, vector<16x8xf32> -> vector<16x8xf32>
    %9 = vector.shape_cast %6 : vector<16x8xf32> to vector<2x8x8xf32>
    %10 = vector.shape_cast %8 : vector<16x8xf32> to vector<2x8x8xf32>
    %c0_8 = arith.constant 0 : index
    %c0_9 = arith.constant 0 : index
    %c0_10 = arith.constant 0 : index
    %11 = vector.load %arg3[%c0_8, %c0_9, %c0_10] : memref<2x8x8xf32, #tpu.memory_space<vmem>>, vector<2x8x8xf32>
    %cst_11 = arith.constant dense<0.000000e+00> : vector<2x8x8xf32>
    %12 = tpu.matmul %11, %9, %cst_11 {dimension_numbers = #tpu.dot_dimension_numbers<[2], [1], [1], [2], [0, 0, 0, 1, 1, 2], [0], [0]>} : vector<2x8x8xf32>, vector<2x8x8xf32>, vector<2x8x8xf32> -> vector<2x8x8xf32>
    %c0_12 = arith.constant 0 : index
    %c0_13 = arith.constant 0 : index
    %c0_14 = arith.constant 0 : index
    %13 = vector.load %arg11[%c0_12, %c0_13, %c0_14] : memref<2x8x1xf32, #tpu.memory_space<vmem>>, vector<2x8x1xf32>
    %cst_15 = arith.constant dense<0xFF800000> : vector<2x8xf32>
    %14 = vector.multi_reduction <maximumf>, %12, %cst_15 [2] : vector<2x8x8xf32> to vector<2x8xf32>
    %15 = vector.shape_cast %14 : vector<2x8xf32> to vector<2x8x1xf32>
    %16 = arith.maximumf %13, %15 : vector<2x8x1xf32>
    %17 = arith.subf %13, %16 : vector<2x8x1xf32>
    %18 = math.exp %17 : vector<2x8x1xf32>
    %19 = vector.broadcast %16 : vector<2x8x1xf32> to vector<2x8x8xf32>
    %20 = arith.subf %12, %19 : vector<2x8x8xf32>
    %21 = math.exp %20 : vector<2x8x8xf32>
    %c0_16 = arith.constant 0 : index
    %c0_17 = arith.constant 0 : index
    %c0_18 = arith.constant 0 : index
    %22 = vector.load %arg12[%c0_16, %c0_17, %c0_18] : memref<2x8x1xf32, #tpu.memory_space<vmem>>, vector<2x8x1xf32>
    %23 = arith.mulf %18, %22 : vector<2x8x1xf32>
    %cst_19 = arith.constant dense<0.000000e+00> : vector<2x8xf32>
    %24 = vector.multi_reduction <add>, %21, %cst_19 [2] : vector<2x8x8xf32> to vector<2x8xf32>
    %25 = vector.shape_cast %24 : vector<2x8xf32> to vector<2x8x1xf32>
    %26 = arith.addf %23, %25 : vector<2x8x1xf32>
    %c0_20 = arith.constant 0 : index
    %c0_21 = arith.constant 0 : index
    %c0_22 = arith.constant 0 : index
    %27 = vector.load %arg12[%c0_20, %c0_21, %c0_22] : memref<2x8x1xf32, #tpu.memory_space<vmem>>, vector<2x8x1xf32>
    tpu.vector_store %arg12[%c0_20, %c0_21, %c0_22], %26 {strides = array<i32>} : memref<2x8x1xf32, #tpu.memory_space<vmem>>, vector<2x8x1xf32>,
    %cst_23 = arith.constant dense<0.000000e+00> : vector<2x8x8xf32>
    %28 = tpu.matmul %21, %10, %cst_23 {dimension_numbers = #tpu.dot_dimension_numbers<[2], [2], [1], [1], [0, 0, 0, 1, 1, 1], [0], [0]>} : vector<2x8x8xf32>, vector<2x8x8xf32>, vector<2x8x8xf32> -> vector<2x8x8xf32>
    %c0_24 = arith.constant 0 : index
    %c0_25 = arith.constant 0 : index
    %c0_26 = arith.constant 0 : index
    %29 = vector.load %arg13[%c0_24, %c0_25, %c0_26] : memref<2x8x8xf32, #tpu.memory_space<vmem>>, vector<2x8x8xf32>
    %30 = vector.broadcast %18 : vector<2x8x1xf32> to vector<2x8x8xf32>
    %31 = arith.mulf %30, %29 : vector<2x8x8xf32>
    %32 = arith.addf %31, %28 : vector<2x8x8xf32>
    %c0_27 = arith.constant 0 : index
    %c0_28 = arith.constant 0 : index
    %c0_29 = arith.constant 0 : index
    %33 = vector.load %arg13[%c0_27, %c0_28, %c0_29] : memref<2x8x8xf32, #tpu.memory_space<vmem>>, vector<2x8x8xf32>
    tpu.vector_store %arg13[%c0_27, %c0_28, %c0_29], %32 {strides = array<i32>} : memref<2x8x8xf32, #tpu.memory_space<vmem>>, vector<2x8x8xf32>,
    %c0_30 = arith.constant 0 : index
    %c0_31 = arith.constant 0 : index
    %c0_32 = arith.constant 0 : index
    %34 = vector.load %arg11[%c0_30, %c0_31, %c0_32] : memref<2x8x1xf32, #tpu.memory_space<vmem>>, vector<2x8x1xf32>
    tpu.vector_store %arg11[%c0_30, %c0_31, %c0_32], %16 {strides = array<i32>} : memref<2x8x1xf32, #tpu.memory_space<vmem>>, vector<2x8x1xf32>,
    %c0_i32_33 = arith.constant 0 : i32
    %35 = arith.cmpi eq, %arg1, %c0_i32_33 : i32
    %36 = arith.extui %35 : i1 to i32
    %c0_i32_34 = arith.constant 0 : i32
    %37 = arith.cmpi ne, %36, %c0_i32_34 : i32
    scf.if %37 {
      %c0_35 = arith.constant 0 : index
      %c0_36 = arith.constant 0 : index
      %c0_37 = arith.constant 0 : index
      %38 = vector.load %arg13[%c0_35, %c0_36, %c0_37] : memref<2x8x8xf32, #tpu.memory_space<vmem>>, vector<2x8x8xf32>
      %c0_38 = arith.constant 0 : index
      %c0_39 = arith.constant 0 : index
      %c0_40 = arith.constant 0 : index
      %39 = vector.load %arg12[%c0_38, %c0_39, %c0_40] : memref<2x8x1xf32, #tpu.memory_space<vmem>>, vector<2x8x1xf32>
      %40 = vector.broadcast %39 : vector<2x8x1xf32> to vector<2x8x8xf32>
      %41 = arith.divf %38, %40 : vector<2x8x8xf32>
      %42 = vector.extract_strided_slice %41 {offsets = [0, 0, 0], sizes = [1, 8, 8], strides = [1, 1, 1]} : vector<2x8x8xf32> to vector<1x8x8xf32>
      %43 = vector.shape_cast %42 : vector<1x8x8xf32> to vector<8x8xf32>
      %44 = vector.extract_strided_slice %41 {offsets = [1, 0, 0], sizes = [1, 8, 8], strides = [1, 1, 1]} : vector<2x8x8xf32> to vector<1x8x8xf32>
      %45 = vector.shape_cast %44 : vector<1x8x8xf32> to vector<8x8xf32>
      %46 = tpu.concatenate %43, %45 in 1 : vector<8x8xf32>, vector<8x8xf32> -> vector<8x16xf32>
      %c0_41 = arith.constant 0 : index
      %c0_42 = arith.constant 0 : index
      %47 = vector.load %arg7[%c0_41, %c0_42] : memref<16x32xf32, #tpu.memory_space<vmem>>, vector<16x32xf32>
      %cst_43 = arith.constant dense<0.000000e+00> : vector<8x32xf32>
      %48 = tpu.matmul %46, %47, %cst_43 {dimension_numbers = #tpu.dot_dimension_numbers<[1], [0], [0], [1], [0, 0, 1, 1], [], []>} : vector<8x16xf32>, vector<16x32xf32>, vector<8x32xf32> -> vector<8x32xf32>
      %c0_44 = arith.constant 0 : index
      %c0_45 = arith.constant 0 : index
      %49 = vector.load %arg4[%c0_44, %c0_45] : memref<8x32xf32, #tpu.memory_space<vmem>>, vector<8x32xf32>
      %50 = arith.addf %48, %49 : vector<8x32xf32>
      %cst_46 = arith.constant dense<0.000000e+00> : vector<8xf32>
      %51 = vector.multi_reduction <add>, %50, %cst_46 [1] : vector<8x32xf32> to vector<8xf32>
      %52 = vector.shape_cast %51 : vector<8xf32> to vector<8x1xf32>
      %cst_47 = arith.constant 3.200000e+01 : f32
      %53 = vector.broadcast %cst_47 : f32 to vector<8x1xf32>
      %54 = arith.divf %52, %53 : vector<8x1xf32>
      %55 = vector.broadcast %54 : vector<8x1xf32> to vector<8x32xf32>
      %56 = arith.subf %50, %55 : vector<8x32xf32>
      %57 = arith.mulf %56, %56 : vector<8x32xf32>
      %cst_48 = arith.constant dense<0.000000e+00> : vector<8xf32>
      %58 = vector.multi_reduction <add>, %57, %cst_48 [1] : vector<8x32xf32> to vector<8xf32>
      %59 = vector.shape_cast %58 : vector<8xf32> to vector<8x1xf32>
      %cst_49 = arith.constant 3.200000e+01 : f32
      %60 = vector.broadcast %cst_49 : f32 to vector<8x1xf32>
      %61 = arith.divf %59, %60 : vector<8x1xf32>
      %cst_50 = arith.constant 9.99999997E-7 : f32
      %62 = vector.broadcast %cst_50 : f32 to vector<8x1xf32>
      %63 = arith.addf %61, %62 : vector<8x1xf32>
      %64 = math.rsqrt %63 : vector<8x1xf32>
      %65 = vector.broadcast %64 : vector<8x1xf32> to vector<8x32xf32>
      %66 = arith.mulf %56, %65 : vector<8x32xf32>
      %c0_51 = arith.constant 0 : index
      %c0_52 = arith.constant 0 : index
      %67 = vector.load %arg8[%c0_51, %c0_52] : memref<1x32xf32, #tpu.memory_space<vmem>>, vector<1x32xf32>
      %68 = vector.broadcast %67 : vector<1x32xf32> to vector<8x32xf32>
      %69 = arith.mulf %66, %68 : vector<8x32xf32>
      %c0_53 = arith.constant 0 : index
      %c0_54 = arith.constant 0 : index
      %70 = vector.load %arg9[%c0_53, %c0_54] : memref<1x32xf32, #tpu.memory_space<vmem>>, vector<1x32xf32>
      %71 = vector.broadcast %70 : vector<1x32xf32> to vector<8x32xf32>
      %72 = arith.addf %69, %71 : vector<8x32xf32>
      %c0_55 = arith.constant 0 : index
      %c0_56 = arith.constant 0 : index
      %c0_57 = arith.constant 0 : index
      %73 = vector.load %arg10[%c0_55, %c0_56, %c0_57] : memref<1x8x32xf32, #tpu.memory_space<vmem>>, vector<1x8x32xf32>
      %74 = vector.shape_cast %73 : vector<1x8x32xf32> to vector<8x32xf32>
      %75 = vector.shape_cast %72 : vector<8x32xf32> to vector<1x8x32xf32>
      tpu.vector_store %arg10[%c0_55, %c0_56, %c0_57], %75 {strides = array<i32>} : memref<1x8x32xf32, #tpu.memory_space<vmem>>, vector<1x8x32xf32>,
    } else {
    }
    return
  }
  func.func @transform_0(%arg0: i32, %arg1: i32) -> (i32, i32, i32) {
    %c0_i32 = arith.constant 0 : i32
    %c0_i32_0 = arith.constant 0 : i32
    return %arg0, %arg1, %c0_i32 : i32, i32, i32
  }
  func.func @transform_1(%arg0: i32, %arg1: i32) -> (i32, i32, i32) {
    %c0_i32 = arith.constant 0 : i32
    %c0_i32_0 = arith.constant 0 : i32
    %c0_i32_1 = arith.constant 0 : i32
    %c0_i32_2 = arith.constant 0 : i32
    return %c0_i32, %c0_i32_0, %c0_i32_1 : i32, i32, i32
  }
  func.func @transform_2(%arg0: i32, %arg1: i32) -> (i32, i32) {
    %c0_i32 = arith.constant 0 : i32
    %c0_i32_0 = arith.constant 0 : i32
    %c0_i32_1 = arith.constant 0 : i32
    return %c0_i32, %c0_i32_0 : i32, i32
  }
  func.func @transform_3(%arg0: i32, %arg1: i32) -> (i32, i32) {
    %c0_i32 = arith.constant 0 : i32
    %c0_i32_0 = arith.constant 0 : i32
    %c0_i32_1 = arith.constant 0 : i32
    return %c0_i32, %c0_i32_0 : i32, i32
  }
  func.func @transform_4(%arg0: i32, %arg1: i32) -> (i32, i32) {
    %c0_i32 = arith.constant 0 : i32
    %c0_i32_0 = arith.constant 0 : i32
    %c0_i32_1 = arith.constant 0 : i32
    return %c0_i32, %c0_i32_0 : i32, i32
  }
  func.func @transform_5(%arg0: i32, %arg1: i32) -> (i32, i32) {
    %c0_i32 = arith.constant 0 : i32
    %c0_i32_0 = arith.constant 0 : i32
    %c0_i32_1 = arith.constant 0 : i32
    return %c0_i32, %c0_i32_0 : i32, i32
  }
  func.func @transform_6(%arg0: i32, %arg1: i32) -> (i32, i32) {
    %c0_i32 = arith.constant 0 : i32
    %c0_i32_0 = arith.constant 0 : i32
    %c0_i32_1 = arith.constant 0 : i32
    return %c0_i32, %c0_i32_0 : i32, i32
  }
  func.func @transform_7(%arg0: i32, %arg1: i32) -> (i32, i32) {
    %c0_i32 = arith.constant 0 : i32
    %c0_i32_0 = arith.constant 0 : i32
    %c0_i32_1 = arith.constant 0 : i32
    return %c0_i32, %c0_i32_0 : i32, i32
  }
  func.func @transform_8(%arg0: i32, %arg1: i32) -> (i32, i32, i32) {
    %c0_i32 = arith.constant 0 : i32
    %c0_i32_0 = arith.constant 0 : i32
    %c0_i32_1 = arith.constant 0 : i32
    return %arg0, %c0_i32, %c0_i32_0 : i32, i32, i32
  }
}

</mosaic_0001>

<llo_original>
// kernel: tpu_custom_call.1
$region0: #{tpu_custom_call.1}
  #allocation0 [shape = 'u32[]', space=smem, size = 0x4, offset = 0x4, fixed_abs, tag = 'smem constant byte address 0x4 - core index']
  #allocation1 [shape = 'u32[72,128]{1,0:T(1,128)}', space=vmem, size = 0x9000, scoped, tag = 'internal scratch']
  #allocation2 [shape = 'f32[2,8,1]{2,1,0:T(8,128)}', space=vmem, size = 0x2000, scoped, tag = 'scratch operand']
  #allocation3 [shape = 'f32[2,8,1]{2,1,0:T(8,128)}', space=vmem, size = 0x2000, scoped, tag = 'scratch operand']
  #allocation4 [shape = 'f32[2,8,8]{2,1,0:T(8,128)}', space=vmem, size = 0x2000, scoped, tag = 'scratch operand']
  %s0 = inlined_call_operand.hbm [shape: f32[2,8,32], index: 0, kind: input, shape index: {}]
  %s1 = inlined_call_operand.hbm [shape: f32[2,8,8], index: 1, kind: input, shape index: {}]
  %s2 = inlined_call_operand.hbm [shape: f32[8,32], index: 2, kind: input, shape index: {}]
  %s3 = inlined_call_operand.hbm [shape: f32[16,32], index: 3, kind: input, shape index: {}]
  %s4 = inlined_call_operand.hbm [shape: f32[16,32], index: 4, kind: input, shape index: {}]
  %s5 = inlined_call_operand.hbm [shape: f32[16,32], index: 5, kind: input, shape index: {}]
  %s6 = inlined_call_operand.vmem [shape: f32[1,32], index: 6, kind: input, shape index: {}]
  %s7 = inlined_call_operand.vmem [shape: f32[1,32], index: 7, kind: input, shape index: {}]
  %s8 = inlined_call_operand.hbm [shape: f32[2,8,32], index: 8, kind: output, shape index: {}]
  %s9 = sld [smem:[#allocation0]]
  $region97: #{tpu_custom_call.1} parent=0
    _
  %s11 = ssub.s32 1, %s9
  %s12 = scalar_select 0, %s11, %s9
  $region1: #{tpu_custom_call.1} parent=0
    #allocation5 [shape = 'u8[8192]{0}', space=vmem, size = 0x2000, scoped, tag = 'input window, operand 0']
    #allocation6 [shape = 's32[2]{0}', space=sflag, size = 0x8, scoped, tag = 'scoped memory for tpu_custom_call.1']
    #allocation7 [shape = 's32[2]{0}', space=sflag, size = 0x8, scoped, tag = 'scoped memory for tpu_custom_call.1']
    #allocation8 [shape = 'u8[8192]{0}', space=vmem, size = 0x2000, scoped, tag = 'input window, operand 1, single buffered']
    #allocation9 [shape = 's32[1]{0}', space=sflag, size = 0x4, scoped, tag = 'scoped memory for tpu_custom_call.1']
    #allocation10 [shape = 'u8[4096]{0}', space=vmem, size = 0x1000, scoped, tag = 'input window, operand 2, single buffered']
    #allocation11 [shape = 'u8[8192]{0}', space=vmem, size = 0x2000, scoped, tag = 'input window, operand 3, single buffered']
    #allocation12 [shape = 's32[1]{0}', space=sflag, size = 0x4, scoped, tag = 'scoped memory for tpu_custom_call.1']
    #allocation13 [shape = 'u8[8192]{0}', space=vmem, size = 0x2000, scoped, tag = 'input window, operand 4, single buffered']
    #allocation14 [shape = 'u8[8192]{0}', space=vmem, size = 0x2000, scoped, tag = 'input window, operand 5, single buffered']
    #allocation15 [shape = 's32[1]{0}', space=sflag, size = 0x4, scoped, tag = 'scoped memory for tpu_custom_call.1']
    #allocation16 [shape = 'u8[8192]{0}', space=vmem, size = 0x2000, scoped, tag = 'output window, operand 0']
    %13 = vsyncpa [#allocation6], 0
    %s14 = scalar_lea.sflag [#allocation6], 1
    %15 = vsyncpa %s14, 0
    %16 = vsyncpa [#allocation9], 0
    %17 = vsyncpa [#allocation12], 0
    %18 = vsyncpa [#allocation15], 0
    %19 = vsyncpa [#allocation7], 0
    %s20 = scalar_lea.sflag [#allocation7], 1
    %21 = vsyncpa %s20, 0
    loop: start=0, step=1, limit=4
    $region2: #{tpu_custom_call.1} parent=1 // loop_pre_header
      _
    $region3: #{tpu_custom_call.1} parent=1 // loop_header
      %s23 = sphi 0, %s27
      %p24 = scmp.ge.s32.totalorder %s23, 4
      %s30 = sphi 0, %s42
      %s31 = sphi 0, %s38
      %s32 = sphi 0, %s30
      %s33 = sphi 0, %s31
      %s34 = sphi 0, %s32
      %s35 = sphi 0, %s33
      %s47 = sphi 0, %s49
      %s50 = sphi 0, %s47
      %s51 = sphi 0, %s50
      %s67 = sphi 0, %s51
      %s71 = sphi 0, %s71
      %s73 = sphi 0, %s71
      %s74 = sphi 0, %s73
      %s88 = sphi 0, %s74
      %s92 = sphi 0, %s92
      %s94 = sphi 0, %s92
      %s95 = sphi 0, %s94
      %s109 = sphi 0, %s95
      %s113 = sphi 0, %s113
      %s115 = sphi 0, %s113
      %s116 = sphi 0, %s115
      %s130 = sphi 0, %s116
      %s134 = sphi 0, %s134
      %s136 = sphi 0, %s134
      %s137 = sphi 0, %s136
      %s151 = sphi 0, %s137
      %s155 = sphi 0, %s155
      %s157 = sphi 0, %s155
      %s158 = sphi 0, %s157
      %s172 = sphi 0, %s158
      %s176 = sphi 0, %s176
      %s178 = sphi 0, %s176
      %s179 = sphi 0, %s178
      %s193 = sphi 0, %s179
      %s197 = sphi 0, %s197
      %s199 = sphi 0, %s197
      %s200 = sphi 0, %s199
      %s214 = sphi 0, %s200
      %s220 = sphi 0, %s222
      %s223 = sphi 0, %s220
      %s224 = sphi 0, %s223
      %s240 = sphi 0, %s224
    $region4: #{tpu_custom_call.1} parent=1 // loop_header_branch
      %26 = sbr.rel (%p24) target = $region8
    $region5: #{tpu_custom_call.1} parent=1 // loop_body
      %s28 = ssub.s32 %s23, 1
      %s29 = ssub.s32 %s23, 2
      %s36 = sadd.s32 1, %s31
      %p37 = scmp.ge.s32.totalorder %s36, 1
      %s38 = scalar_select %p37, 0, %s36
      %s39 = sadd.s32 1, %s30
      %s40 = scalar_select %p37, %s39, %s30
      %p41 = scmp.ge.s32.totalorder %s40, 2
      %s42 = scalar_select %p41, 0, %s40
      %s43 = ssub.s32 %s30, %s42
      %s44 = ssub.s32 %s31, %s38
      %s45 = sor.u32 %s43, %s44
      %p46 = scmp.eq.s32.totalorder %s45, 0
      %s48 = sadd.s32 %s47, 1
      %s49 = scalar_select %p46, %s47, %s48
      %p52 = pneg %p46
      %p53 = scmp.eq.s32.totalorder %s23, 1
      %p54 = por %p52, %p53
      %p55 = scmp.ne.s32.totalorder %s47, %s50
      %p56 = scmp.eq.s32.totalorder %s23, 0
      %p57 = por %p55, %p56
      %p58 = scmp.ne.s32.totalorder %s47, %s50
      %p59 = scmp.eq.s32.totalorder %s28, 1
      %p60 = por %p58, %p59
      %p61 = scmp.ne.s32.totalorder %s50, %s51
      %p62 = scmp.eq.s32.totalorder %s28, 0
      %p63 = por %p61, %p62
      %p64 = scmp.ne.s32.totalorder %s50, %s51
      %p65 = scmp.eq.s32.totalorder %s29, 1
      %p66 = por %p64, %p65
      %p68 = scmp.ne.s32.totalorder %s51, %s67
      %p69 = scmp.eq.s32.totalorder %s29, 0
      %p70 = por %p68, %p69
      %s72 = sadd.s32 %s71, 1
      %p75 = scmp.eq.s32.totalorder %s23, 1
      %p76 = scmp.ne.s32.totalorder %s71, %s73
      %p77 = scmp.eq.s32.totalorder %s23, 0
      %p78 = por %p76, %p77
      %p79 = scmp.ne.s32.totalorder %s71, %s73
      %p80 = scmp.eq.s32.totalorder %s28, 1
      %p81 = por %p79, %p80
      %p82 = scmp.ne.s32.totalorder %s73, %s74
      %p83 = scmp.eq.s32.totalorder %s28, 0
      %p84 = por %p82, %p83
      %p85 = scmp.ne.s32.totalorder %s73, %s74
      %p86 = scmp.eq.s32.totalorder %s29, 1
      %p87 = por %p85, %p86
      %p89 = scmp.ne.s32.totalorder %s74, %s88
      %p90 = scmp.eq.s32.totalorder %s29, 0
      %p91 = por %p89, %p90
      %s93 = sadd.s32 %s92, 1
      %p96 = scmp.eq.s32.totalorder %s23, 1
      %p97 = scmp.ne.s32.totalorder %s92, %s94
      %p98 = scmp.eq.s32.totalorder %s23, 0
      %p99 = por %p97, %p98
      %p100 = scmp.ne.s32.totalorder %s92, %s94
      %p101 = scmp.eq.s32.totalorder %s28, 1
      %p102 = por %p100, %p101
      %p103 = scmp.ne.s32.totalorder %s94, %s95
      %p104 = scmp.eq.s32.totalorder %s28, 0
      %p105 = por %p103, %p104
      %p106 = scmp.ne.s32.totalorder %s94, %s95
      %p107 = scmp.eq.s32.totalorder %s29, 1
      %p108 = por %p106, %p107
      %p110 = scmp.ne.s32.totalorder %s95, %s109
      %p111 = scmp.eq.s32.totalorder %s29, 0
      %p112 = por %p110, %p111
      %s114 = sadd.s32 %s113, 1
      %p117 = scmp.eq.s32.totalorder %s23, 1
      %p118 = scmp.ne.s32.totalorder %s113, %s115
      %p119 = scmp.eq.s32.totalorder %s23, 0
      %p120 = por %p118, %p119
      %p121 = scmp.ne.s32.totalorder %s113, %s115
      %p122 = scmp.eq.s32.totalorder %s28, 1
      %p123 = por %p121, %p122
      %p124 = scmp.ne.s32.totalorder %s115, %s116
      %p125 = scmp.eq.s32.totalorder %s28, 0
      %p126 = por %p124, %p125
      %p127 = scmp.ne.s32.totalorder %s115, %s116
      %p128 = scmp.eq.s32.totalorder %s29, 1
      %p129 = por %p127, %p128
      %p131 = scmp.ne.s32.totalorder %s116, %s130
      %p132 = scmp.eq.s32.totalorder %s29, 0
      %p133 = por %p131, %p132
      %s135 = sadd.s32 %s134, 1
      %p138 = scmp.eq.s32.totalorder %s23, 1
      %p139 = scmp.ne.s32.totalorder %s134, %s136
      %p140 = scmp.eq.s32.totalorder %s23, 0
      %p141 = por %p139, %p140
      %p142 = scmp.ne.s32.totalorder %s134, %s136
      %p143 = scmp.eq.s32.totalorder %s28, 1
      %p144 = por %p142, %p143
      %p145 = scmp.ne.s32.totalorder %s136, %s137
      %p146 = scmp.eq.s32.totalorder %s28, 0
      %p147 = por %p145, %p146
      %p148 = scmp.ne.s32.totalorder %s136, %s137
      %p149 = scmp.eq.s32.totalorder %s29, 1
      %p150 = por %p148, %p149
      %p152 = scmp.ne.s32.totalorder %s137, %s151
      %p153 = scmp.eq.s32.totalorder %s29, 0
      %p154 = por %p152, %p153
      %s156 = sadd.s32 %s155, 1
      %p159 = scmp.eq.s32.totalorder %s23, 1
      %p160 = scmp.ne.s32.totalorder %s155, %s157
      %p161 = scmp.eq.s32.totalorder %s23, 0
      %p162 = por %p160, %p161
      %p163 = scmp.ne.s32.totalorder %s155, %s157
      %p164 = scmp.eq.s32.totalorder %s28, 1
      %p165 = por %p163, %p164
      %p166 = scmp.ne.s32.totalorder %s157, %s158
      %p167 = scmp.eq.s32.totalorder %s28, 0
      %p168 = por %p166, %p167
      %p169 = scmp.ne.s32.totalorder %s157, %s158
      %p170 = scmp.eq.s32.totalorder %s29, 1
      %p171 = por %p169, %p170
      %p173 = scmp.ne.s32.totalorder %s158, %s172
      %p174 = scmp.eq.s32.totalorder %s29, 0
      %p175 = por %p173, %p174
      %s177 = sadd.s32 %s176, 1
      %p180 = scmp.eq.s32.totalorder %s23, 1
      %p181 = scmp.ne.s32.totalorder %s176, %s178
      %p182 = scmp.eq.s32.totalorder %s23, 0
      %p183 = por %p181, %p182
      %p184 = scmp.ne.s32.totalorder %s176, %s178
      %p185 = scmp.eq.s32.totalorder %s28, 1
      %p186 = por %p184, %p185
      %p187 = scmp.ne.s32.totalorder %s178, %s179
      %p188 = scmp.eq.s32.totalorder %s28, 0
      %p189 = por %p187, %p188
      %p190 = scmp.ne.s32.totalorder %s178, %s179
      %p191 = scmp.eq.s32.totalorder %s29, 1
      %p192 = por %p190, %p191
      %p194 = scmp.ne.s32.totalorder %s179, %s193
      %p195 = scmp.eq.s32.totalorder %s29, 0
      %p196 = por %p194, %p195
      %s198 = sadd.s32 %s197, 1
      %p201 = scmp.eq.s32.totalorder %s23, 1
      %p202 = scmp.ne.s32.totalorder %s197, %s199
      %p203 = scmp.eq.s32.totalorder %s23, 0
      %p204 = por %p202, %p203
      %p205 = scmp.ne.s32.totalorder %s197, %s199
      %p206 = scmp.eq.s32.totalorder %s28, 1
      %p207 = por %p205, %p206
      %p208 = scmp.ne.s32.totalorder %s199, %s200
      %p209 = scmp.eq.s32.totalorder %s28, 0
      %p210 = por %p208, %p209
      %p211 = scmp.ne.s32.totalorder %s199, %s200
      %p212 = scmp.eq.s32.totalorder %s29, 1
      %p213 = por %p211, %p212
      %p215 = scmp.ne.s32.totalorder %s200, %s214
      %p216 = scmp.eq.s32.totalorder %s29, 0
      %p217 = por %p215, %p216
      %s218 = ssub.s32 %s30, %s42
      %p219 = scmp.eq.s32.totalorder %s218, 0
      %s221 = sadd.s32 %s220, 1
      %s222 = scalar_select %p219, %s220, %s221
      %p225 = pneg %p219
      %p226 = scmp.eq.s32.totalorder %s23, 1
      %p227 = por %p225, %p226
      %p228 = scmp.ne.s32.totalorder %s220, %s223
      %p229 = scmp.eq.s32.totalorder %s23, 0
      %p230 = por %p228, %p229
      %p231 = scmp.ne.s32.totalorder %s220, %s223
      %p232 = scmp.eq.s32.totalorder %s28, 1
      %p233 = por %p231, %p232
      %p234 = scmp.ne.s32.totalorder %s223, %s224
      %p235 = scmp.eq.s32.totalorder %s28, 0
      %p236 = por %p234, %p235
      %p237 = scmp.ne.s32.totalorder %s223, %s224
      %p238 = scmp.eq.s32.totalorder %s29, 1
      %p239 = por %p237, %p238
      %p241 = scmp.ne.s32.totalorder %s224, %s240
      %p242 = scmp.eq.s32.totalorder %s29, 0
      %p243 = por %p241, %p242
      %p244 = scmp.le.s32.totalorder 1, %s23
      %p245 = scmp.lt.s32.totalorder %s23, 3
      %p246 = pnand %p244, %p245
      %p247 = pneg %p246
      // Predicated region
      $region9: #{tpu_custom_call.1} parent=5 // pred_check
        _
      $region10: #{tpu_custom_call.1} parent=5 // pred_check_branch
        %249 = sbr.rel (%p246) target = $region12
      $region11: #{tpu_custom_call.1} parent=5 // pred_region
        %s250 = ssub.s32 %s23, 1
        // Predicated region
        $region13: #{tpu_custom_call.1} parent=11 // pred_check
          %p251 = pneg %p84
        $region14: #{tpu_custom_call.1} parent=11 // pred_check_branch
          %253 = sbr.rel (%p251) target = $region16
        $region15: #{tpu_custom_call.1} parent=11 // pred_region
          %255 = vsyncadd [#allocation9], 0
          %s256 = sshll.u32 %s1, 4
          %s257 = int_to_ptr.hbm [resolvable:$true] %s256
          %s258 = sshll.u32 [#allocation8], 4
          %s259 = int_to_ptr.vmem [resolvable:$true] %s258
          %264 = dma.hbm_to_vmem [thread:$0]  %s257, 256, %s259, [#allocation9], 128, 128, 8
        $region16: #{tpu_custom_call.1} parent=11 // pred_fallthru
          _
        // Predicated region
        $region17: #{tpu_custom_call.1} parent=11 // pred_check
          %p265 = pneg %p105
        $region18: #{tpu_custom_call.1} parent=11 // pred_check_branch
          %267 = sbr.rel (%p265) target = $region20
        $region19: #{tpu_custom_call.1} parent=11 // pred_region
          %269 = vsyncadd [#allocation9], 0
          %s271 = sshll.u32 %s2, 4
          %s272 = int_to_ptr.hbm [resolvable:$true] %s271
          %s273 = sshll.u32 [#allocation10], 4
          %s274 = int_to_ptr.vmem [resolvable:$true] %s273
          %276 = dma.hbm_to_vmem [thread:$0]  %s272, 128, %s274, [#allocation9]
        $region20: #{tpu_custom_call.1} parent=11 // pred_fallthru
          _
        // Predicated region
        $region21: #{tpu_custom_call.1} parent=11 // pred_check
          %p277 = pneg %p126
        $region22: #{tpu_custom_call.1} parent=11 // pred_check_branch
          %279 = sbr.rel (%p277) target = $region24
        $region23: #{tpu_custom_call.1} parent=11 // pred_region
          %281 = vsyncadd [#allocation12], 0
          %s282 = sshll.u32 %s3, 4
          %s283 = int_to_ptr.hbm [resolvable:$true] %s282
          %s284 = sshll.u32 [#allocation11], 4
          %s285 = int_to_ptr.vmem [resolvable:$true] %s284
          %290 = dma.hbm_to_vmem [thread:$0]  %s283, 256, %s285, [#allocation12], 128, 128, 8
        $region24: #{tpu_custom_call.1} parent=11 // pred_fallthru
          _
        // Predicated region
        $region25: #{tpu_custom_call.1} parent=11 // pred_check
          %p291 = pneg %p147
        $region26: #{tpu_custom_call.1} parent=11 // pred_check_branch
          %293 = sbr.rel (%p291) target = $region28
        $region27: #{tpu_custom_call.1} parent=11 // pred_region
          %295 = vsyncadd [#allocation12], 0
          %s296 = sshll.u32 %s4, 4
          %s297 = int_to_ptr.hbm [resolvable:$true] %s296
          %s298 = sshll.u32 [#allocation13], 4
          %s299 = int_to_ptr.vmem [resolvable:$true] %s298
          %304 = dma.hbm_to_vmem [thread:$0]  %s297, 256, %s299, [#allocation12], 128, 128, 8
        $region28: #{tpu_custom_call.1} parent=11 // pred_fallthru
          _
        // Predicated region
        $region29: #{tpu_custom_call.1} parent=11 // pred_check
          %p305 = pneg %p168
        $region30: #{tpu_custom_call.1} parent=11 // pred_check_branch
          %307 = sbr.rel (%p305) target = $region32
        $region31: #{tpu_custom_call.1} parent=11 // pred_region
          %309 = vsyncadd [#allocation15], 0
          %s310 = sshll.u32 %s5, 4
          %s311 = int_to_ptr.hbm [resolvable:$true] %s310
          %s312 = sshll.u32 [#allocation14], 4
          %s313 = int_to_ptr.vmem [resolvable:$true] %s312
          %318 = dma.hbm_to_vmem [thread:$0]  %s311, 256, %s313, [#allocation15], 128, 128, 8
        $region32: #{tpu_custom_call.1} parent=11 // pred_fallthru
          _
        // Predicated region
        $region33: #{tpu_custom_call.1} parent=11 // pred_check
          %p319 = pneg %p189
        $region34: #{tpu_custom_call.1} parent=11 // pred_check_branch
          %321 = sbr.rel (%p319) target = $region36
        $region35: #{tpu_custom_call.1} parent=11 // pred_region
          _
        $region36: #{tpu_custom_call.1} parent=11 // pred_fallthru
          _
        // Predicated region
        $region37: #{tpu_custom_call.1} parent=11 // pred_check
          %p322 = pneg %p210
        $region38: #{tpu_custom_call.1} parent=11 // pred_check_branch
          %324 = sbr.rel (%p322) target = $region40
        $region39: #{tpu_custom_call.1} parent=11 // pred_region
          _
        $region40: #{tpu_custom_call.1} parent=11 // pred_fallthru
          _
      $region12: #{tpu_custom_call.1} parent=5 // pred_fallthru
        _
      %p325 = scmp.lt.s32.totalorder %s23, 2
      // Predicated region
      $region41: #{tpu_custom_call.1} parent=5 // pred_check
        %p326 = pneg %p325
      $region42: #{tpu_custom_call.1} parent=5 // pred_check_branch
        %328 = sbr.rel (%p326) target = $region44
      $region43: #{tpu_custom_call.1} parent=5 // pred_region
        // Predicated region
        $region45: #{tpu_custom_call.1} parent=43 // pred_check
          %p329 = pneg %p57
        $region46: #{tpu_custom_call.1} parent=43 // pred_check_branch
          %331 = sbr.rel (%p329) target = $region48
        $region47: #{tpu_custom_call.1} parent=43 // pred_region
          %s332 = sand.u32 %s47, 1
          %s333 = scalar_lea.sflag [#allocation6], %s332
          %s334 = sand.u32 %s47, 1
          %s335 = smul.addr %s334, 8
          %s336 = scalar_lea.vmem [#allocation5], %s335
          %338 = vsyncadd %s333, 0
          %s339 = sadd.s32 %s31, %s30
          %s340 = smul.addr %s339, 8
          %s341 = scalar_lea.hbm %s0, %s340
          %s343 = sshll.u32 %s341, 4
          %s344 = int_to_ptr.hbm [resolvable:$true] %s343
          %s345 = sshll.u32 %s336, 4
          %s346 = int_to_ptr.vmem [resolvable:$true] %s345
          %348 = dma.hbm_to_vmem [thread:$0]  %s344, 128, %s346, %s333
        $region48: #{tpu_custom_call.1} parent=43 // pred_fallthru
          _
      $region44: #{tpu_custom_call.1} parent=5 // pred_fallthru
        _
      %p349 = scmp.le.s32.totalorder 1, %s23
      %p350 = scmp.lt.s32.totalorder %s23, 3
      %p351 = pnand %p349, %p350
      %p352 = pneg %p351
      // Predicated region
      $region49: #{tpu_custom_call.1} parent=5 // pred_check
        _
      $region50: #{tpu_custom_call.1} parent=5 // pred_check_branch
        %354 = sbr.rel (%p351) target = $region52
      $region51: #{tpu_custom_call.1} parent=5 // pred_region
        %s355 = ssub.s32 %s23, 1
        %s356 = sand.u32 %s50, 1
        %s357 = scalar_lea.sflag [#allocation6], %s356
        %s358 = sand.u32 %s50, 1
        %s359 = smul.addr %s358, 8
        %s360 = scalar_lea.vmem [#allocation5], %s359
        // Predicated region
        $region53: #{tpu_custom_call.1} parent=51 // pred_check
          %p361 = pneg %p63
        $region54: #{tpu_custom_call.1} parent=51 // pred_check_branch
          %363 = sbr.rel (%p361) target = $region56
        $region55: #{tpu_custom_call.1} parent=51 // pred_region
          %365 = dma.done %s357, 128
        $region56: #{tpu_custom_call.1} parent=51 // pred_fallthru
          _
        // Predicated region
        $region57: #{tpu_custom_call.1} parent=51 // pred_check
          %p366 = pneg %p84
        $region58: #{tpu_custom_call.1} parent=51 // pred_check_branch
          %368 = sbr.rel (%p366) target = $region60
        $region59: #{tpu_custom_call.1} parent=51 // pred_region
          %370 = dma.done [#allocation9], 256
        $region60: #{tpu_custom_call.1} parent=51 // pred_fallthru
          _
        // Predicated region
        $region61: #{tpu_custom_call.1} parent=51 // pred_check
          %p371 = pneg %p105
        $region62: #{tpu_custom_call.1} parent=51 // pred_check_branch
          %373 = sbr.rel (%p371) target = $region64
        $region63: #{tpu_custom_call.1} parent=51 // pred_region
          %375 = dma.done [#allocation9], 128
        $region64: #{tpu_custom_call.1} parent=51 // pred_fallthru
          _
        // Predicated region
        $region65: #{tpu_custom_call.1} parent=51 // pred_check
          %p376 = pneg %p126
        $region66: #{tpu_custom_call.1} parent=51 // pred_check_branch
          %378 = sbr.rel (%p376) target = $region68
        $region67: #{tpu_custom_call.1} parent=51 // pred_region
          %380 = dma.done [#allocation12], 256
        $region68: #{tpu_custom_call.1} parent=51 // pred_fallthru
          _
        // Predicated region
        $region69: #{tpu_custom_call.1} parent=51 // pred_check
          %p381 = pneg %p147
        $region70: #{tpu_custom_call.1} parent=51 // pred_check_branch
          %383 = sbr.rel (%p381) target = $region72
        $region71: #{tpu_custom_call.1} parent=51 // pred_region
          %385 = dma.done [#allocation12], 256
        $region72: #{tpu_custom_call.1} parent=51 // pred_fallthru
          _
        // Predicated region
        $region73: #{tpu_custom_call.1} parent=51 // pred_check
          %p386 = pneg %p168
        $region74: #{tpu_custom_call.1} parent=51 // pred_check_branch
          %388 = sbr.rel (%p386) target = $region76
        $region75: #{tpu_custom_call.1} parent=51 // pred_region
          %390 = dma.done [#allocation15], 256
        $region76: #{tpu_custom_call.1} parent=51 // pred_fallthru
          _
        %s391 = sand.u32 %s50, 1
        %s392 = scalar_lea.sflag [#allocation6], %s391
        %s393 = sand.u32 %s50, 1
        %s394 = smul.addr %s393, 8
        %s395 = scalar_lea.vmem [#allocation5], %s394
        %p396 = pneg %p63
        %p397 = pneg %p60
        %p398 = pneg %p84
        %p399 = pneg %p81
        %p400 = pneg %p105
        %p401 = pneg %p102
        %p402 = pneg %p126
        %p403 = pneg %p123
        %p404 = pneg %p147
        %p405 = pneg %p144
        %p406 = pneg %p168
        %p407 = pneg %p165
        %p408 = pneg %p189
        %p409 = pneg %p186
        %p410 = pneg %p210
        %p411 = pneg %p207
        %p412 = pneg %p236
        %p413 = pneg %p233
        %s414 = sand.u32 %s223, 1
        %s415 = scalar_lea.sflag [#allocation7], %s414
        %s416 = sand.u32 %s223, 1
        %s417 = smul.addr %s416, 8
        %s418 = scalar_lea.vmem [#allocation16], %s417
        %p419 = scmp.eq.s32.totalorder %s33, 0
        // Predicated region
        $region77: #{tpu_custom_call.1} parent=51 // pred_check
          %p420 = pneg %p419
        $region78: #{tpu_custom_call.1} parent=51 // pred_check_branch
          %422 = sbr.rel (%p420) target = $region80
        $region79: #{tpu_custom_call.1} parent=51 // pred_region
          %vm423 = vcmask 7168
          %424 = vst.msk [vmem:[#allocation2] sm:$0xff] %vm423, -inf
          %425 = vst.msk [vmem:[#allocation2 + $0x8] sm:$0xff] %vm423, -inf
          %426 = vst.msk [vmem:[#allocation3] sm:$0xff] %vm423, 0.0
          %427 = vst.msk [vmem:[#allocation3 + $0x8] sm:$0xff] %vm423, 0.0
          %vm428 = vcmask 64512
          %429 = vst.msk [vmem:[#allocation4] sm:$0xff] %vm428, 0.0
          %430 = vst.msk [vmem:[#allocation4 + $0x8] sm:$0xff] %vm428, 0.0
        $region80: #{tpu_custom_call.1} parent=51 // pred_fallthru
          _
        %v431 = vld [vmem:[%s360] sm:$0xff]
        %v432 = vld [vmem:[#allocation11] sm:$0xff]
        %v433 = vld [vmem:[#allocation11 + $0x8] sm:$0xff]
        %vm434 = vcmask 261120
        %v436 = vsel %vm434, %v432, 0
        %v439 = vsel %vm434, %v433, 0
        %v442 = vsel %vm434, %v431, 0
        %444 = vmatpush.xpose.msra.mxu0 0.0
        %445 = vmatpush.xpose.msra.mxu0 0.0
        %446 = vmatpush.xpose.msra.mxu0 0.0
        %447 = vmatpush.xpose.msra.mxu0 0.0
        %448 = vmatpush.xpose.msra.mxu0 0.0
        %449 = vmatpush.xpose.msra.mxu0 0.0
        %450 = vmatpush.xpose.msra.mxu0 0.0
        %451 = vmatpush.xpose.msra.mxu0 0.0
        %452 = vmatpush.xpose.msra.mxu0 0.0
        %453 = vmatpush.xpose.msra.mxu0 0.0
        %454 = vmatpush.xpose.msra.mxu0 0.0
        %455 = vmatpush.xpose.msra.mxu0 0.0
        %456 = vmatpush.xpose.msra.mxu0 0.0
        %457 = vmatpush.xpose.msra.mxu0 0.0
        %458 = vmatpush.xpose.msra.mxu0 0.0
        %459 = vmatpush.xpose.msra.mxu0 %v442
        %460 = vmatmul.f32.gmra.mxu0 %v436
        %v461 = vpop.f32.mrf.mxu0
        %v462 = vadd.f32 0.0, %v461
        %463 = vmatmul.f32.gmra.mxu0 %v439
        %v464 = vpop.f32.mrf.mxu0
        %v465 = vadd.f32 0.0, %v464
        %466 = vdwg.mxu0
        %v467 = vld [vmem:[#allocation13] sm:$0xff]
        %v468 = vld [vmem:[#allocation13 + $0x8] sm:$0xff]
        %v470 = vsel %vm434, %v467, 0
        %v473 = vsel %vm434, %v468, 0
        %475 = vmatpush.xpose.msra.mxu0 0.0
        %476 = vmatpush.xpose.msra.mxu0 0.0
        %477 = vmatpush.xpose.msra.mxu0 0.0
        %478 = vmatpush.xpose.msra.mxu0 0.0
        %479 = vmatpush.xpose.msra.mxu0 0.0
        %480 = vmatpush.xpose.msra.mxu0 0.0
        %481 = vmatpush.xpose.msra.mxu0 0.0
        %482 = vmatpush.xpose.msra.mxu0 0.0
        %483 = vmatpush.xpose.msra.mxu0 0.0
        %484 = vmatpush.xpose.msra.mxu0 0.0
        %485 = vmatpush.xpose.msra.mxu0 0.0
        %486 = vmatpush.xpose.msra.mxu0 0.0
        %487 = vmatpush.xpose.msra.mxu0 0.0
        %488 = vmatpush.xpose.msra.mxu0 0.0
        %489 = vmatpush.xpose.msra.mxu0 0.0
        %490 = vmatpush.xpose.msra.mxu0 %v442
        %491 = vmatmul.f32.gmra.mxu0 %v470
        %v492 = vpop.f32.mrf.mxu0
        %v493 = vadd.f32 0.0, %v492
        %494 = vmatmul.f32.gmra.mxu0 %v473
        %v495 = vpop.f32.mrf.mxu0
        %v496 = vadd.f32 0.0, %v495
        %497 = vdwg.mxu0
        %v498 = vld [vmem:[#allocation8] sm:$0xff]
        %v499 = vld [vmem:[#allocation8 + $0x8] sm:$0xff]
        %vm500 = vcmask 64512
        %v502 = vsel %vm500, %v498, 0
        %504 = vmatpush.msra.mxu0 0.0
        %505 = vmatpush.msra.mxu0 0.0
        %506 = vmatpush.msra.mxu0 0.0
        %507 = vmatpush.msra.mxu0 0.0
        %508 = vmatpush.msra.mxu0 0.0
        %509 = vmatpush.msra.mxu0 0.0
        %510 = vmatpush.msra.mxu0 0.0
        %511 = vmatpush.msra.mxu0 0.0
        %512 = vmatpush.msra.mxu0 0.0
        %513 = vmatpush.msra.mxu0 0.0
        %514 = vmatpush.msra.mxu0 0.0
        %515 = vmatpush.msra.mxu0 0.0
        %516 = vmatpush.msra.mxu0 0.0
        %517 = vmatpush.msra.mxu0 0.0
        %518 = vmatpush.msra.mxu0 0.0
        %519 = vmatpush.msra.mxu0 %v462
        %520 = vmatmul.f32.gmra.mxu0 %v502
        %v521 = vpop.f32.mrf.mxu0
        %v522 = vadd.f32 0.0, %v521
        %523 = vdwg.mxu0
        %v525 = vsel %vm500, %v499, 0
        %527 = vmatpush.msra.mxu0 0.0
        %528 = vmatpush.msra.mxu0 0.0
        %529 = vmatpush.msra.mxu0 0.0
        %530 = vmatpush.msra.mxu0 0.0
        %531 = vmatpush.msra.mxu0 0.0
        %532 = vmatpush.msra.mxu0 0.0
        %533 = vmatpush.msra.mxu0 0.0
        %534 = vmatpush.msra.mxu0 0.0
        %535 = vmatpush.msra.mxu0 0.0
        %536 = vmatpush.msra.mxu0 0.0
        %537 = vmatpush.msra.mxu0 0.0
        %538 = vmatpush.msra.mxu0 0.0
        %539 = vmatpush.msra.mxu0 0.0
        %540 = vmatpush.msra.mxu0 0.0
        %541 = vmatpush.msra.mxu0 0.0
        %542 = vmatpush.msra.mxu0 %v465
        %543 = vmatmul.f32.gmra.mxu0 %v525
        %v544 = vpop.f32.mrf.mxu0
        %v545 = vadd.f32 0.0, %v544
        %546 = vdwg.mxu0
        %v547 = vld [vmem:[#allocation2] sm:$0xff]
        %v548 = vld [vmem:[#allocation2 + $0x8] sm:$0xff]
        %v549 = vsel %vm500, %v522, -inf
        %550 = vmax.xlane.f32.xlu0 %v549
        %v551 = vpop.xlane.xlu0 %550
        %v552 = vsel %vm500, %v545, -inf
        %553 = vmax.xlane.f32.xlu0 %v552
        %v554 = vpop.xlane.xlu0 %553
        %v555 = vmax.f32 %v547, %v551
        %v556 = vmax.f32 %v548, %v554
        %v557 = vsub.f32 %v547, %v555
        %v558 = vsub.f32 %v548, %v556
        %v559 = vmul.f32 %v557, 1.442695
        %v560 = vpow.pop %v559
        %v561 = vmul.f32 %v558, 1.442695
        %v562 = vpow.pop %v561
        %564 = vset.pattern.permute.xlu0 0
        %565 = vperm.xlu0 %564, %v555
        %v566 = vpop.permute.xlu0 %565
        %569 = vset.pattern.permute.xlu0 0
        %570 = vperm.xlu0 %569, %v556
        %v571 = vpop.permute.xlu0 %570
        %v573 = vsub.f32 %v522, %v566
        %v574 = vsub.f32 %v545, %v571
        %v575 = vmul.f32 %v573, 1.442695
        %v576 = vpow.pop %v575
        %v577 = vmul.f32 %v574, 1.442695
        %v578 = vpow.pop %v577
        %v579 = vld [vmem:[#allocation3] sm:$0xff]
        %v580 = vld [vmem:[#allocation3 + $0x8] sm:$0xff]
        %v581 = vmul.f32 %v560, %v579
        %v582 = vmul.f32 %v562, %v580
        %v583 = vsel %vm500, %v576, 0.0
        %584 = vadd.xlane.f32.xlu0 %v583
        %v585 = vpop.xlane.xlu0 %584
        %v586 = vsel %vm500, %v578, 0.0
        %587 = vadd.xlane.f32.xlu0 %v586
        %v588 = vpop.xlane.xlu0 %587
        %v589 = vadd.f32 %v581, %v585
        %v590 = vadd.f32 %v582, %v588
        %vm591 = vcmask 7168
        %592 = vst.msk [vmem:[#allocation3] sm:$0xff] %vm591, %v589
        %593 = vst.msk [vmem:[#allocation3 + $0x8] sm:$0xff] %vm591, %v590
        %v595 = vsel %vm500, %v576, 0
        %v598 = vsel %vm500, %v493, 0
        %600 = vmatpush.xpose.msra.mxu0 0.0
        %601 = vmatpush.xpose.msra.mxu0 0.0
        %602 = vmatpush.xpose.msra.mxu0 0.0
        %603 = vmatpush.xpose.msra.mxu0 0.0
        %604 = vmatpush.xpose.msra.mxu0 0.0
        %605 = vmatpush.xpose.msra.mxu0 0.0
        %606 = vmatpush.xpose.msra.mxu0 0.0
        %607 = vmatpush.xpose.msra.mxu0 0.0
        %608 = vmatpush.xpose.msra.mxu0 0.0
        %609 = vmatpush.xpose.msra.mxu0 0.0
        %610 = vmatpush.xpose.msra.mxu0 0.0
        %611 = vmatpush.xpose.msra.mxu0 0.0
        %612 = vmatpush.xpose.msra.mxu0 0.0
        %613 = vmatpush.xpose.msra.mxu0 0.0
        %614 = vmatpush.xpose.msra.mxu0 0.0
        %615 = vmatpush.xpose.msra.mxu0 %v598
        %616 = vmatmul.f32.gmra.mxu0 %v595
        %v617 = vpop.f32.mrf.mxu0
        %v618 = vadd.f32 0.0, %v617
        %619 = vdwg.mxu0
        %v621 = vsel %vm500, %v578, 0
        %v624 = vsel %vm500, %v496, 0
        %626 = vmatpush.xpose.msra.mxu0 0.0
        %627 = vmatpush.xpose.msra.mxu0 0.0
        %628 = vmatpush.xpose.msra.mxu0 0.0
        %629 = vmatpush.xpose.msra.mxu0 0.0
        %630 = vmatpush.xpose.msra.mxu0 0.0
        %631 = vmatpush.xpose.msra.mxu0 0.0
        %632 = vmatpush.xpose.msra.mxu0 0.0
        %633 = vmatpush.xpose.msra.mxu0 0.0
        %634 = vmatpush.xpose.msra.mxu0 0.0
        %635 = vmatpush.xpose.msra.mxu0 0.0
        %636 = vmatpush.xpose.msra.mxu0 0.0
        %637 = vmatpush.xpose.msra.mxu0 0.0
        %638 = vmatpush.xpose.msra.mxu0 0.0
        %639 = vmatpush.xpose.msra.mxu0 0.0
        %640 = vmatpush.xpose.msra.mxu0 0.0
        %641 = vmatpush.xpose.msra.mxu0 %v624
        %642 = vmatmul.f32.gmra.mxu0 %v621
        %v643 = vpop.f32.mrf.mxu0
        %v644 = vadd.f32 0.0, %v643
        %645 = vdwg.mxu0
        %v646 = vld [vmem:[#allocation4] sm:$0xff]
        %v647 = vld [vmem:[#allocation4 + $0x8] sm:$0xff]
        %649 = vset.pattern.permute.xlu0 0
        %650 = vperm.xlu0 %649, %v560
        %v651 = vpop.permute.xlu0 %650
        %654 = vset.pattern.permute.xlu0 0
        %655 = vperm.xlu0 %654, %v562
        %v656 = vpop.permute.xlu0 %655
        %v658 = vmul.f32 %v651, %v646
        %v659 = vmul.f32 %v656, %v647
        %v660 = vadd.f32 %v658, %v618
        %v661 = vadd.f32 %v659, %v644
        %662 = vst.msk [vmem:[#allocation4] sm:$0xff] %vm500, %v660
        %663 = vst.msk [vmem:[#allocation4 + $0x8] sm:$0xff] %vm500, %v661
        %664 = vst.msk [vmem:[#allocation2] sm:$0xff] %vm591, %v555
        %665 = vst.msk [vmem:[#allocation2 + $0x8] sm:$0xff] %vm591, %v556
        // Predicated region
        $region81: #{tpu_custom_call.1} parent=51 // pred_check
          %p666 = pneg %p419
        $region82: #{tpu_custom_call.1} parent=51 // pred_check_branch
          %668 = sbr.rel (%p666) target = $region84
        $region83: #{tpu_custom_call.1} parent=51 // pred_region
          %v669 = vld [vmem:[#allocation4] sm:$0xff]
          %v670 = vld [vmem:[#allocation4 + $0x8] sm:$0xff]
          %v671 = vld [vmem:[#allocation3] sm:$0xff]
          %v672 = vld [vmem:[#allocation3 + $0x8] sm:$0xff]
          %674 = vset.pattern.permute.xlu0 0
          %675 = vperm.xlu0 %674, %v671
          %v676 = vpop.permute.xlu0 %675
          %679 = vset.pattern.permute.xlu0 0
          %680 = vperm.xlu0 %679, %v672
          %v681 = vpop.permute.xlu0 %680
          %v683 = vrcp.pop %v676
          %v684 = vmul.f32 %v676, %v683
          %v685 = vsub.f32 1.0, %v684
          %v686 = vmul.f32 %v683, %v685
          %v687 = vadd.f32 %v683, %v686
          %vm688 = vweird.f32 %v676
          %vm689 = vweird.f32 %v683
          %vm690 = vmor %vm688, %vm689
          %v691 = vsel %vm690, %v683, %v687
          %v692 = vand.u32 2147483647, %v676
          %vm693 = vcmp.eq.f32.partialorder %v692, 8.507059e+37
          %v694 = vand.u32 %v676, 2147483648
          %v695 = vor.u32 1.1754944e-38, %v694
          %v696 = vsel %vm693, %v695, %v691
          %v697 = vmul.f32 %v669, %v696
          %v698 = vrcp.pop %v681
          %v699 = vmul.f32 %v681, %v698
          %v700 = vsub.f32 1.0, %v699
          %v701 = vmul.f32 %v698, %v700
          %v702 = vadd.f32 %v698, %v701
          %vm703 = vweird.f32 %v681
          %vm704 = vweird.f32 %v698
          %vm705 = vmor %vm703, %vm704
          %v706 = vsel %vm705, %v698, %v702
          %v707 = vand.u32 2147483647, %v681
          %vm708 = vcmp.eq.f32.partialorder %v707, 8.507059e+37
          %v709 = vand.u32 %v681, 2147483648
          %v710 = vor.u32 1.1754944e-38, %v709
          %v711 = vsel %vm708, %v710, %v706
          %v712 = vmul.f32 %v670, %v711
          %714 = vrot.lane.b32.xlu0 %v712, 8
          %v715 = vpop.permute.xlu0 %714
          %v717 = vsel %vm500, %v697, %v715
          %v718 = vld [vmem:[#allocation14] sm:$0xff]
          %v719 = vld [vmem:[#allocation14 + $0x8] sm:$0xff]
          %v720 = vld [vmem:[#allocation10] sm:$0xff]
          %vm721 = vcmask 130048
          %v723 = vsel %vm721, %v717, 0
          %725 = vmatpush.msra.mxu0 0.0
          %726 = vmatpush.msra.mxu0 0.0
          %727 = vmatpush.msra.mxu0 0.0
          %728 = vmatpush.msra.mxu0 0.0
          %729 = vmatpush.msra.mxu0 0.0
          %730 = vmatpush.msra.mxu0 0.0
          %731 = vmatpush.msra.mxu0 0.0
          %732 = vmatpush.msra.mxu0 0.0
          %733 = vmatpush.msra.mxu0 0.0
          %734 = vmatpush.msra.mxu0 0.0
          %735 = vmatpush.msra.mxu0 0.0
          %736 = vmatpush.msra.mxu0 0.0
          %737 = vmatpush.msra.mxu0 0.0
          %738 = vmatpush.msra.mxu0 0.0
          %739 = vmatpush.msra.mxu0 %v719
          %740 = vmatpush.msra.mxu0 %v718
          %741 = vmatmul.f32.gmra.mxu0 %v723
          %v742 = vpop.f32.mrf.mxu0
          %v743 = vadd.f32 %v720, %v742
          %744 = vdwg.mxu0
          %v745 = vsel %vm434, %v743, 0.0
          %746 = vadd.xlane.f32.xlu0 %v745
          %v747 = vpop.xlane.xlu0 %746
          %v748 = vrcp.pop 32.0
          %v749 = vmul.f32 32.0, %v748
          %v750 = vsub.f32 1.0, %v749
          %v751 = vmul.f32 %v748, %v750
          %v752 = vadd.f32 %v748, %v751
          %vm753 = vweird.f32 %v748
          %v754 = vsel %vm753, %v748, %v752
          %v755 = vmul.f32 %v747, %v754
          %v756 = vsub.f32 %v743, %v755
          %v757 = vmul.f32 %v756, %v756
          %v758 = vsel %vm434, %v757, 0.0
          %759 = vadd.xlane.f32.xlu0 %v758
          %v760 = vpop.xlane.xlu0 %759
          %v761 = vmul.f32 %v760, %v754
          %v762 = vadd.f32 %v761, 1e-06
          %v763 = vrsqrt.pop %v762
          %v764 = vmul.f32 %v763, %v762
          %v765 = vmul.f32 %v764, %v763
          %v766 = vmul.f32 0.5, %v765
          %v767 = vsub.f32 1.5, %v766
          %v768 = vmul.f32 %v763, %v767
          %vm769 = vweird.f32 %v762
          %vm770 = vweird.f32 %v763
          %vm771 = vmor %vm769, %vm770
          %v772 = vsel %vm771, %v763, %v768
          %v773 = vmul.f32 %v756, %v772
          %v774 = vld [vmem:[%s6] sm:$0x1]
          %v776 = vperm.slane %v774, 0
          %v778 = vmul.f32 %v773, %v776
          %v779 = vld [vmem:[%s7] sm:$0x1]
          %v781 = vperm.slane %v779, 0
          %v783 = vadd.f32 %v778, %v781
          %784 = vst.msk [vmem:[%s418] sm:$0xff] %vm434, %v783
        $region84: #{tpu_custom_call.1} parent=51 // pred_fallthru
          _
        %s785 = sand.u32 %s223, 1
        %s786 = scalar_lea.sflag [#allocation7], %s785
        %s787 = sand.u32 %s223, 1
        %s788 = smul.addr %s787, 8
        %s789 = scalar_lea.vmem [#allocation16], %s788
        // Predicated region
        $region85: #{tpu_custom_call.1} parent=51 // pred_check
          %p790 = pneg %p233
        $region86: #{tpu_custom_call.1} parent=51 // pred_check_branch
          %792 = sbr.rel (%p790) target = $region88
        $region87: #{tpu_custom_call.1} parent=51 // pred_region
          %794 = vsyncadd %s786, 0
          %s795 = smul.addr %s32, 8
          %s796 = scalar_lea.hbm %s8, %s795
          %s798 = sshll.u32 %s789, 4
          %s799 = int_to_ptr.vmem [resolvable:$true] %s798
          %s800 = sshll.u32 %s796, 4
          %s801 = int_to_ptr.hbm [resolvable:$true] %s800
          %803 = dma.vmem_to_hbm [thread:$0]  %s799, 128, %s801, %s786
        $region88: #{tpu_custom_call.1} parent=51 // pred_fallthru
          _
      $region52: #{tpu_custom_call.1} parent=5 // pred_fallthru
        _
      %p804 = scmp.le.s32.totalorder 2, %s23
      // Predicated region
      $region89: #{tpu_custom_call.1} parent=5 // pred_check
        %p805 = pneg %p804
      $region90: #{tpu_custom_call.1} parent=5 // pred_check_branch
        %807 = sbr.rel (%p805) target = $region92
      $region91: #{tpu_custom_call.1} parent=5 // pred_region
        %s808 = ssub.s32 %s23, 2
        // Predicated region
        $region93: #{tpu_custom_call.1} parent=91 // pred_check
          %p809 = pneg %p239
        $region94: #{tpu_custom_call.1} parent=91 // pred_check_branch
          %811 = sbr.rel (%p809) target = $region96
        $region95: #{tpu_custom_call.1} parent=91 // pred_region
          %s812 = sand.u32 %s224, 1
          %s813 = scalar_lea.sflag [#allocation7], %s812
          %s814 = sand.u32 %s224, 1
          %s815 = smul.addr %s814, 8
          %s816 = scalar_lea.vmem [#allocation16], %s815
          %818 = dma.done %s813, 128
        $region96: #{tpu_custom_call.1} parent=91 // pred_fallthru
          _
      $region92: #{tpu_custom_call.1} parent=5 // pred_fallthru
        _
    $region6: #{tpu_custom_call.1} parent=1 // loop_footer
      %s27 = sadd.s32 1, %s23
    $region7: #{tpu_custom_call.1} parent=1 // loop_footer_branch
      %22 = sbr.rel target = $region3
    $region8: #{tpu_custom_call.1} parent=1 // loop_exit
      _
    %819 = vsyncpa [#allocation6], 1
    %s820 = scalar_lea.sflag [#allocation6], 1
    %821 = vsyncpa %s820, 1
    %822 = vsyncpa [#allocation9], 1
    %823 = vsyncpa [#allocation12], 1
    %824 = vsyncpa [#allocation15], 1
    %825 = vsyncpa [#allocation7], 1
    %s826 = scalar_lea.sflag [#allocation7], 1
    %827 = vsyncpa %s826, 1

</llo_original>
